<compile_context>
chip_gen: v6e
topology: v6e:2x2x1
jax: 0.10.0
libtpu: 0.0.40
codegen_flags: <defaults>
</compile_context>

<pallas_src>
import functools

import jax
import jax.numpy as jnp
from jax import lax
from jax.experimental import pallas as pl
from jax.experimental.pallas import tpu as pltpu

N_TERMS = 2          # self.N in the PyTorch module
TOL = 1e-12          # self.tol
TINY = 1e-12         # clamp for eigenvalues / disc (robustness only)
LANE = 128
MAX_BLOCK_ROWS = 1024   # 3*1024*128*4 B = 1.5 MiB per block per array
MIN_GRID_STEPS = 4      # v7x: >= 2 (ideally 4) grid steps so both TensorCores get work


def _cdiv(a, b):
    return -(-a // b)


def _round_up(x, m):
    return _cdiv(x, m) * m


def _make_stress_kernel(K, mu_p, alpha_p):
    """Build the kernel with material parameters baked in as compile-time constants."""
    Kc = float(K)
    a = tuple(float(x) for x in alpha_p)
    # c_p = mu_p / (alpha_p + tol);  ca_p = c_p * alpha_p  (folded once at trace time)
    c = tuple(float(m) / (float(x) + TOL) for m, x in zip(mu_p, alpha_p))
    ca = tuple(ci * ai for ci, ai in zip(c, a))

    def kernel(s_ref, g_ref):
        # s_ref, g_ref: VMEM [3, block_rows, 128]; the component axis leads so each
        # component is a dense lane-major slab (full 8x128 vreg occupancy, unmasked
        # stores).  Math is f32 regardless of the HBM-facing dtype (review #6).
        s0 = s_ref[0].astype(jnp.float32)   # eps_xx
        s1 = s_ref[1].astype(jnp.float32)   # eps_yy
        s2 = s_ref[2].astype(jnp.float32)   # gamma_xy

        # C = 2E + I (2x2 symmetric):  C01 = 2 * (0.5*gamma_xy) = gamma_xy
        C00 = 2.0 * s0 + 1.0
        C11 = 2.0 * s1 + 1.0
        C01 = s2

        d = C00 - C11
        tr = C00 + C11
        dd = d * d + 4.0 * (C01 * C01)                  # disc^2 >= 0
        invdisc = lax.rsqrt(jnp.maximum(dd, TINY))      # one rsqrt replaces sqrt + divide
        disc = dd * invdisc                             # sqrt(dd); exactly 0 when dd == 0

        lamsq0 = jnp.maximum(0.5 * (tr - disc), TINY)   # eigenvalues of C (ascending)
        lamsq1 = jnp.maximum(0.5 * (tr + disc), TINY)
        # det derived from the SAME clamped quantities as the logs below (consistency).
        det = lamsq0 * lamsq1
        invJ = lax.rsqrt(det)                           # det^(-1/2); exact (volumetric term
        J = det * invJ                                  # is a near-cancellation around J~1)
        invdet = invJ * invJ

        lg0 = jnp.log(lamsq0)
        lg1 = jnp.log(lamsq1)
        ld = lg0 + lg1                                  # log(det) derived: one fewer EUP log
        # log of isochoric stretches r_i = sqrt(lamsq_i) * J^(-1/3)  (shared logs)
        l0 = 0.5 * lg0 - ld * (1.0 / 6.0)
        l1 = 0.5 * lg1 - ld * (1.0 / 6.0)

        # T_i = sum_p c_p*alpha_p * r_i^alpha_p ;  S adds the (r0*r1)^(-alpha_p) term.
        T0 = jnp.zeros_like(s0)
        T1 = jnp.zeros_like(s0)
        S = jnp.zeros_like(s0)
        for p in range(N_TERMS):
            e0 = jnp.exp(a[p] * l0)                     # r0 ** alpha_p
            e1 = jnp.exp(a[p] * l1)                     # r1 ** alpha_p
            ej = jnp.exp((-a[p] / 6.0) * ld)            # J ** (-alpha_p/3)
            T0 = T0 + ca[p] * e0
            T1 = T1 + ca[p] * e1
            S = S + ca[p] * (e0 + e1 + ej)

        # dW/d(lamsq_i); lamsq0*lamsq1 == det avoids extra divides.
        G0 = 0.5 * T0 * lamsq1 * invdet
        G1 = 0.5 * T1 * lamsq0 * invdet
        Gsum = G0 + G1
        # (G1 - G0)*invdisc multiplies d or C01 (both |.| <= disc), so the coincident-
        # eigenvalue limit is recovered exactly (ratio -> 0, no NaN at disc = 0).
        ratio = (G1 - G0) * invdisc
        # dW/d(det)
        AD = 0.5 * Kc * (1.0 - invJ) - S * invdet * (1.0 / 6.0)

        # chain rule: d(det)/ds = (2C11, 2C00, -2C01); d(lamsq_{0,1})/ds via d, C01, disc.
        g_ref[0] = (2.0 * C11 * AD + Gsum + ratio * d).astype(g_ref.dtype)
        g_ref[1] = (2.0 * C00 * AD + Gsum - ratio * d).astype(g_ref.dtype)
        g_ref[2] = (2.0 * C01 * (ratio - AD)).astype(g_ref.dtype)

    return kernel


def _ogden_grad_flat(s, K, mu_p, alpha_p, max_block_rows=MAX_BLOCK_ROWS):
    """s: component-major (3, M).  Returns dW/dstrain as (3, M), same dtype."""
    three, M = s.shape
    assert three == 3
    if s.dtype not in (jnp.float32, jnp.bfloat16):
        s = s.astype(jnp.float32)
    dtype = s.dtype
    sub = 8 if dtype == jnp.float32 else 16         # native sublane tile

    rows = _cdiv(M, LANE)
    # Review #2/#3/#7: pick the number of grid steps first (>= MIN_GRID_STEPS when there
    # is enough work so both v7x TensorCores see >= 2 steps each), then the block size.
    n_blocks = max(_cdiv(rows, max_block_rows), min(MIN_GRID_STEPS, _cdiv(rows, sub)))
    block_rows = _round_up(_cdiv(rows, n_blocks), sub)
    n_blocks = _cdiv(rows, block_rows)
    rows_pad = n_blocks * block_rows
    M_pad = rows_pad * LANE

    if M_pad > M:
        # Zero-strain padding is safe (the analytic gradient is finite at C == I); the
        # padded lanes are sliced off below.  No-op (no extra HBM pass) when M already
        # matches the padded extent.
        s = jnp.pad(s, ((0, 0), (0, M_pad - M)))
    s = s.reshape(3, rows_pad, LANE)

    kernel = _make_stress_kernel(K, mu_p, alpha_p)
    itemsize = jnp.dtype(dtype).itemsize
    cost = pl.CostEstimate(                          # review #10: refreshed counts
        flops=70 * M_pad,
        transcendentals=10 * M_pad,                  # 2 log + 6 exp + 2 rsqrt per element
        bytes_accessed=2 * 3 * M_pad * itemsize,
    )

    g = pl.pallas_call(
        kernel,
        out_shape=jax.ShapeDtypeStruct((3, rows_pad, LANE), dtype),
        grid=(n_blocks,),
        in_specs=[pl.BlockSpec((3, block_rows, LANE), lambda i: (0, i, 0))],
        out_specs=pl.BlockSpec((3, block_rows, LANE), lambda i: (0, i, 0)),
        compiler_params=pltpu.CompilerParams(
            # "parallel" lets the runtime shard the row axis across the two v7x
            # TensorCores (review #3).
            # TODO(synk): confirm the dual-TC split in a v7x profile; switch this axis to
            # pltpu.CORE_PARALLEL (or pl.core_map over a TensorCore mesh) if it does not.
            dimension_semantics=("parallel",),
        ),
        cost_estimate=cost,
    )(s)

    g = g.reshape(3, M_pad)
    return g[:, :M] if M_pad > M else g


def stress_predictor_component_major(s, K, mu_p, alpha_p):
    """Preferred entry point (review #1): `s` is component-major (3, ...).

    Zero layout plumbing: data streams straight through the kernel (the only extra HBM
    pass is a tail pad when the element count is not a multiple of 128)."""
    assert s.shape[0] == 3
    g = _ogden_grad_flat(s.reshape(3, -1), K, mu_p, alpha_p)
    return g.reshape(s.shape)


def stress_predictor(strain, K, mu_p, alpha_p):
    """Torch-compatible interface: strain (B, T, 3) -> dW/dstrain (B, T, 3).

    The (M, 3) <-> (3, M) transposes below exist only to service this interface; jit this
    together with the producer/consumer so XLA fuses them into the neighbouring ops, or use
    `stress_predictor_component_major` to avoid them entirely (review #1).
    """
    B, T, C = strain.shape
    assert C == 3
    M = B * T
    s = jnp.transpose(strain.reshape(M, 3), (1, 0))       # (3, M); fuses with pad under jit
    g = _ogden_grad_flat(s, K, mu_p, alpha_p)
    return jnp.transpose(g, (1, 0)).reshape(B, T, 3)


def reference_grad(strain, K, mu_p, alpha_p):
    """Pure-JAX reference mirroring the torch forward (eigvalsh + autodiff)."""
    def W_sum(st):
        E = jnp.zeros(st.shape[:2] + (2, 2), dtype=st.dtype)
        E = E.at[:, :, 0, 0].set(st[:, :, 0])
        E = E.at[:, :, 1, 1].set(st[:, :, 1])
        E = E.at[:, :, 0, 1].set(0.5 * st[:, :, 2])
        E = E.at[:, :, 1, 0].set(0.5 * st[:, :, 2])
        Cm = 2.0 * E + jnp.eye(2, dtype=st.dtype)
        J = jnp.linalg.det(Cm) ** 0.5
        sq = jnp.linalg.eigvalsh(Cm)
        eig = jnp.sqrt(sq)
        aux = J ** (-1.0 / 3.0)
        r0 = eig[:, :, 0] * aux
        r1 = eig[:, :, 1] * aux
        W = 0.5 * K * (J - 1.0) ** 2
        for p in range(N_TERMS):
            W = W + mu_p[p] / (alpha_p[p] + TOL) * (
                r0 ** alpha_p[p] + r1 ** alpha_p[p]
                + (1.0 / (r0 * r1)) ** alpha_p[p] - 3.0)
        return jnp.sum(W)
    return jax.grad(W_sum)(strain)


if __name__ == "__main__":
    # Deterministic parameters consistent with the module's __init__ sign pattern:
    #   K = 1.0; (mu_p[p], alpha_p[p]) = (-1)^(p+2) * (1 + rand): p=0 positive, p=1 negative.
    K = 1.0
    mu_p = (1.5, -1.3)
    alpha_p = (1.7, -1.4)

    fn = jax.jit(functools.partial(stress_predictor, K=K, mu_p=mu_p, alpha_p=alpha_p))
    fn_cm = jax.jit(functools.partial(stress_predictor_component_major,
                                      K=K, mu_p=mu_p, alpha_p=alpha_p))

    key = jax.random.PRNGKey(0)
    k1, k2 = jax.random.split(key)

    # Shape 1: small, torch-compatible interface.
    B, T = 2, 8
    strain = 0.1 * jax.random.normal(k1, (B, T, 3), dtype=jnp.float32)
    out = jax.block_until_ready(fn(strain))
    ref = reference_grad(strain, K, mu_p, alpha_p)
    assert out.shape == (B, T, 3)
    assert bool(jnp.allclose(out, ref, rtol=5e-4, atol=1e-5)), (out, ref)

    # Shape 2: odd element count -> exercises the n_blocks-first padding rule (review #2).
    strain2 = 0.1 * jax.random.normal(k2, (3, 50, 3), dtype=jnp.float32)
    out2 = jax.block_until_ready(fn(strain2))
    ref2 = reference_grad(strain2, K, mu_p, alpha_p)
    assert bool(jnp.allclose(out2, ref2, rtol=5e-4, atol=1e-5)), (out2, ref2)

    # Preferred component-major entry point (no wrapper transposes) agrees with the wrapper.
    out_cm = jax.block_until_ready(fn_cm(jnp.moveaxis(strain, -1, 0)))
    assert bool(jnp.allclose(jnp.moveaxis(out_cm, 0, -1), out, rtol=1e-6, atol=1e-7))

    # Robustness at coincident eigenvalues (zero strain), where autodiff through the
    # eigen-decomposition would NaN but the analytic gradient is finite.
    out0 = jax.block_until_ready(fn(jnp.zeros((B, T, 3), jnp.float32)))
    assert bool(jnp.all(jnp.isfinite(out0)))

    print("KERNEL_OK")
</pallas_src>

<mosaic_0001>
module attributes {stable_mosaic.version = 11 : i64} {
  func.func @kernel(%arg0: i32, %arg1: memref<3x8x128xf32, #tpu.memory_space<vmem>>, %arg2: memref<3x8x128xf32, #tpu.memory_space<vmem>>) attributes {dimension_semantics = [#tpu.dimension_semantics<parallel>], iteration_bounds = array<i64: 1>, scalar_prefetch = 0 : i64, scratch_operands = 0 : i64, tpu.core_type = #tpu.core_type<tc>, window_params = [{transform_indices = @transform_0, window_bounds = array<i64: 3, 8, 128>}, {transform_indices = @transform_1, window_bounds = array<i64: 3, 8, 128>}]} {
    %c0 = arith.constant 0 : index
    %c0_0 = arith.constant 0 : index
    %c0_1 = arith.constant 0 : index
    %0 = vector.load %arg1[%c0, %c0_0, %c0_1] : memref<3x8x128xf32, #tpu.memory_space<vmem>>, vector<1x8x128xf32>
    %1 = vector.shape_cast %0 : vector<1x8x128xf32> to vector<8x128xf32>
    %c1 = arith.constant 1 : index
    %c0_2 = arith.constant 0 : index
    %c0_3 = arith.constant 0 : index
    %2 = vector.load %arg1[%c1, %c0_2, %c0_3] : memref<3x8x128xf32, #tpu.memory_space<vmem>>, vector<1x8x128xf32>
    %3 = vector.shape_cast %2 : vector<1x8x128xf32> to vector<8x128xf32>
    %c2 = arith.constant 2 : index
    %c0_4 = arith.constant 0 : index
    %c0_5 = arith.constant 0 : index
    %4 = vector.load %arg1[%c2, %c0_4, %c0_5] : memref<3x8x128xf32, #tpu.memory_space<vmem>>, vector<1x8x128xf32>
    %5 = vector.shape_cast %4 : vector<1x8x128xf32> to vector<8x128xf32>
    %cst = arith.constant 2.000000e+00 : f32
    %6 = vector.broadcast %cst : f32 to vector<8x128xf32>
    %7 = arith.mulf %6, %1 : vector<8x128xf32>
    %cst_6 = arith.constant 1.000000e+00 : f32
    %8 = vector.broadcast %cst_6 : f32 to vector<8x128xf32>
    %9 = arith.addf %7, %8 : vector<8x128xf32>
    %cst_7 = arith.constant 2.000000e+00 : f32
    %10 = vector.broadcast %cst_7 : f32 to vector<8x128xf32>
    %11 = arith.mulf %10, %3 : vector<8x128xf32>
    %cst_8 = arith.constant 1.000000e+00 : f32
    %12 = vector.broadcast %cst_8 : f32 to vector<8x128xf32>
    %13 = arith.addf %11, %12 : vector<8x128xf32>
    %14 = arith.subf %9, %13 : vector<8x128xf32>
    %15 = arith.addf %9, %13 : vector<8x128xf32>
    %16 = arith.mulf %14, %14 : vector<8x128xf32>
    %17 = arith.mulf %5, %5 : vector<8x128xf32>
    %cst_9 = arith.constant 4.000000e+00 : f32
    %18 = vector.broadcast %cst_9 : f32 to vector<8x128xf32>
    %19 = arith.mulf %18, %17 : vector<8x128xf32>
    %20 = arith.addf %16, %19 : vector<8x128xf32>
    %cst_10 = arith.constant 9.99999996E-13 : f32
    %21 = vector.broadcast %cst_10 : f32 to vector<8x128xf32>
    %22 = arith.maximumf %20, %21 : vector<8x128xf32>
    %23 = math.rsqrt %22 : vector<8x128xf32>
    %24 = arith.mulf %20, %23 : vector<8x128xf32>
    %25 = arith.subf %15, %24 : vector<8x128xf32>
    %cst_11 = arith.constant 5.000000e-01 : f32
    %26 = vector.broadcast %cst_11 : f32 to vector<8x128xf32>
    %27 = arith.mulf %26, %25 : vector<8x128xf32>
    %cst_12 = arith.constant 9.99999996E-13 : f32
    %28 = vector.broadcast %cst_12 : f32 to vector<8x128xf32>
    %29 = arith.maximumf %27, %28 : vector<8x128xf32>
    %30 = arith.addf %15, %24 : vector<8x128xf32>
    %cst_13 = arith.constant 5.000000e-01 : f32
    %31 = vector.broadcast %cst_13 : f32 to vector<8x128xf32>
    %32 = arith.mulf %31, %30 : vector<8x128xf32>
    %cst_14 = arith.constant 9.99999996E-13 : f32
    %33 = vector.broadcast %cst_14 : f32 to vector<8x128xf32>
    %34 = arith.maximumf %32, %33 : vector<8x128xf32>
    %35 = arith.mulf %29, %34 : vector<8x128xf32>
    %36 = math.rsqrt %35 : vector<8x128xf32>
    %37 = arith.mulf %36, %36 : vector<8x128xf32>
    %38 = math.log %29 : vector<8x128xf32>
    %39 = math.log %34 : vector<8x128xf32>
    %40 = arith.addf %38, %39 : vector<8x128xf32>
    %cst_15 = arith.constant 5.000000e-01 : f32
    %41 = vector.broadcast %cst_15 : f32 to vector<8x128xf32>
    %42 = arith.mulf %41, %38 : vector<8x128xf32>
    %cst_16 = arith.constant 0.166666672 : f32
    %43 = vector.broadcast %cst_16 : f32 to vector<8x128xf32>
    %44 = arith.mulf %40, %43 : vector<8x128xf32>
    %45 = arith.subf %42, %44 : vector<8x128xf32>
    %cst_17 = arith.constant 5.000000e-01 : f32
    %46 = vector.broadcast %cst_17 : f32 to vector<8x128xf32>
    %47 = arith.mulf %46, %39 : vector<8x128xf32>
    %cst_18 = arith.constant 0.166666672 : f32
    %48 = vector.broadcast %cst_18 : f32 to vector<8x128xf32>
    %49 = arith.mulf %40, %48 : vector<8x128xf32>
    %50 = arith.subf %47, %49 : vector<8x128xf32>
    %cst_19 = arith.constant 0.000000e+00 : f32
    %51 = vector.broadcast %cst_19 : f32 to vector<8x128xf32>
    %cst_20 = arith.constant 0.000000e+00 : f32
    %52 = vector.broadcast %cst_20 : f32 to vector<8x128xf32>
    %cst_21 = arith.constant 0.000000e+00 : f32
    %53 = vector.broadcast %cst_21 : f32 to vector<8x128xf32>
    %cst_22 = arith.constant 1.700000e+00 : f32
    %54 = vector.broadcast %cst_22 : f32 to vector<8x128xf32>
    %55 = arith.mulf %54, %45 : vector<8x128xf32>
    %56 = math.exp %55 : vector<8x128xf32>
    %cst_23 = arith.constant 1.700000e+00 : f32
    %57 = vector.broadcast %cst_23 : f32 to vector<8x128xf32>
    %58 = arith.mulf %57, %50 : vector<8x128xf32>
    %59 = math.exp %58 : vector<8x128xf32>
    %cst_24 = arith.constant -0.283333331 : f32
    %60 = vector.broadcast %cst_24 : f32 to vector<8x128xf32>
    %61 = arith.mulf %60, %40 : vector<8x128xf32>
    %62 = math.exp %61 : vector<8x128xf32>
    %cst_25 = arith.constant 1.500000e+00 : f32
    %63 = vector.broadcast %cst_25 : f32 to vector<8x128xf32>
    %64 = arith.mulf %63, %56 : vector<8x128xf32>
    %65 = arith.addf %51, %64 : vector<8x128xf32>
    %cst_26 = arith.constant 1.500000e+00 : f32
    %66 = vector.broadcast %cst_26 : f32 to vector<8x128xf32>
    %67 = arith.mulf %66, %59 : vector<8x128xf32>
    %68 = arith.addf %52, %67 : vector<8x128xf32>
    %69 = arith.addf %56, %59 : vector<8x128xf32>
    %70 = arith.addf %69, %62 : vector<8x128xf32>
    %cst_27 = arith.constant 1.500000e+00 : f32
    %71 = vector.broadcast %cst_27 : f32 to vector<8x128xf32>
    %72 = arith.mulf %71, %70 : vector<8x128xf32>
    %73 = arith.addf %53, %72 : vector<8x128xf32>
    %cst_28 = arith.constant -1.400000e+00 : f32
    %74 = vector.broadcast %cst_28 : f32 to vector<8x128xf32>
    %75 = arith.mulf %74, %45 : vector<8x128xf32>
    %76 = math.exp %75 : vector<8x128xf32>
    %cst_29 = arith.constant -1.400000e+00 : f32
    %77 = vector.broadcast %cst_29 : f32 to vector<8x128xf32>
    %78 = arith.mulf %77, %50 : vector<8x128xf32>
    %79 = math.exp %78 : vector<8x128xf32>
    %cst_30 = arith.constant 0.233333334 : f32
    %80 = vector.broadcast %cst_30 : f32 to vector<8x128xf32>
    %81 = arith.mulf %80, %40 : vector<8x128xf32>
    %82 = math.exp %81 : vector<8x128xf32>
    %cst_31 = arith.constant -1.300000e+00 : f32
    %83 = vector.broadcast %cst_31 : f32 to vector<8x128xf32>
    %84 = arith.mulf %83, %76 : vector<8x128xf32>
    %85 = arith.addf %65, %84 : vector<8x128xf32>
    %cst_32 = arith.constant -1.300000e+00 : f32
    %86 = vector.broadcast %cst_32 : f32 to vector<8x128xf32>
    %87 = arith.mulf %86, %79 : vector<8x128xf32>
    %88 = arith.addf %68, %87 : vector<8x128xf32>
    %89 = arith.addf %76, %79 : vector<8x128xf32>
    %90 = arith.addf %89, %82 : vector<8x128xf32>
    %cst_33 = arith.constant -1.300000e+00 : f32
    %91 = vector.broadcast %cst_33 : f32 to vector<8x128xf32>
    %92 = arith.mulf %91, %90 : vector<8x128xf32>
    %93 = arith.addf %73, %92 : vector<8x128xf32>
    %cst_34 = arith.constant 5.000000e-01 : f32
    %94 = vector.broadcast %cst_34 : f32 to vector<8x128xf32>
    %95 = arith.mulf %94, %85 : vector<8x128xf32>
    %96 = arith.mulf %95, %34 : vector<8x128xf32>
    %97 = arith.mulf %96, %37 : vector<8x128xf32>
    %cst_35 = arith.constant 5.000000e-01 : f32
    %98 = vector.broadcast %cst_35 : f32 to vector<8x128xf32>
    %99 = arith.mulf %98, %88 : vector<8x128xf32>
    %100 = arith.mulf %99, %29 : vector<8x128xf32>
    %101 = arith.mulf %100, %37 : vector<8x128xf32>
    %102 = arith.addf %97, %101 : vector<8x128xf32>
    %103 = arith.subf %101, %97 : vector<8x128xf32>
    %104 = arith.mulf %103, %23 : vector<8x128xf32>
    %cst_36 = arith.constant 1.000000e+00 : f32
    %105 = vector.broadcast %cst_36 : f32 to vector<8x128xf32>
    %106 = arith.subf %105, %36 : vector<8x128xf32>
    %cst_37 = arith.constant 5.000000e-01 : f32
    %107 = vector.broadcast %cst_37 : f32 to vector<8x128xf32>
    %108 = arith.mulf %107, %106 : vector<8x128xf32>
    %109 = arith.mulf %93, %37 : vector<8x128xf32>
    %cst_38 = arith.constant 0.166666672 : f32
    %110 = vector.broadcast %cst_38 : f32 to vector<8x128xf32>
    %111 = arith.mulf %109, %110 : vector<8x128xf32>
    %112 = arith.subf %108, %111 : vector<8x128xf32>
    %cst_39 = arith.constant 2.000000e+00 : f32
    %113 = vector.broadcast %cst_39 : f32 to vector<8x128xf32>
    %114 = arith.mulf %113, %13 : vector<8x128xf32>
    %115 = arith.mulf %114, %112 : vector<8x128xf32>
    %116 = arith.addf %115, %102 : vector<8x128xf32>
    %117 = arith.mulf %104, %14 : vector<8x128xf32>
    %118 = arith.addf %116, %117 : vector<8x128xf32>
    %c0_40 = arith.constant 0 : index
    %c0_41 = arith.constant 0 : index
    %c0_42 = arith.constant 0 : index
    %119 = vector.load %arg2[%c0_40, %c0_41, %c0_42] : memref<3x8x128xf32, #tpu.memory_space<vmem>>, vector<1x8x128xf32>
    %120 = vector.shape_cast %119 : vector<1x8x128xf32> to vector<8x128xf32>
    %121 = vector.shape_cast %118 : vector<8x128xf32> to vector<1x8x128xf32>
    tpu.vector_store %arg2[%c0_40, %c0_41, %c0_42], %121 {strides = array<i32>} : memref<3x8x128xf32, #tpu.memory_space<vmem>>, vector<1x8x128xf32>,
    %cst_43 = arith.constant 2.000000e+00 : f32
    %122 = vector.broadcast %cst_43 : f32 to vector<8x128xf32>
    %123 = arith.mulf %122, %9 : vector<8x128xf32>
    %124 = arith.mulf %123, %112 : vector<8x128xf32>
    %125 = arith.addf %124, %102 : vector<8x128xf32>
    %126 = arith.mulf %104, %14 : vector<8x128xf32>
    %127 = arith.subf %125, %126 : vector<8x128xf32>
    %c1_44 = arith.constant 1 : index
    %c0_45 = arith.constant 0 : index
    %c0_46 = arith.constant 0 : index
    %128 = vector.load %arg2[%c1_44, %c0_45, %c0_46] : memref<3x8x128xf32, #tpu.memory_space<vmem>>, vector<1x8x128xf32>
    %129 = vector.shape_cast %128 : vector<1x8x128xf32> to vector<8x128xf32>
    %130 = vector.shape_cast %127 : vector<8x128xf32> to vector<1x8x128xf32>
    tpu.vector_store %arg2[%c1_44, %c0_45, %c0_46], %130 {strides = array<i32>} : memref<3x8x128xf32, #tpu.memory_space<vmem>>, vector<1x8x128xf32>,
    %cst_47 = arith.constant 2.000000e+00 : f32
    %131 = vector.broadcast %cst_47 : f32 to vector<8x128xf32>
    %132 = arith.mulf %131, %5 : vector<8x128xf32>
    %133 = arith.subf %104, %112 : vector<8x128xf32>
    %134 = arith.mulf %132, %133 : vector<8x128xf32>
    %c2_48 = arith.constant 2 : index
    %c0_49 = arith.constant 0 : index
    %c0_50 = arith.constant 0 : index
    %135 = vector.load %arg2[%c2_48, %c0_49, %c0_50] : memref<3x8x128xf32, #tpu.memory_space<vmem>>, vector<1x8x128xf32>
    %136 = vector.shape_cast %135 : vector<1x8x128xf32> to vector<8x128xf32>
    %137 = vector.shape_cast %134 : vector<8x128xf32> to vector<1x8x128xf32>
    tpu.vector_store %arg2[%c2_48, %c0_49, %c0_50], %137 {strides = array<i32>} : memref<3x8x128xf32, #tpu.memory_space<vmem>>, vector<1x8x128xf32>,
    return
  }
  func.func @transform_0(%arg0: i32) -> (i32, i32, i32) {
    %c0_i32 = arith.constant 0 : i32
    %c0_i32_0 = arith.constant 0 : i32
    %c0_i32_1 = arith.constant 0 : i32
    return %c0_i32, %arg0, %c0_i32_0 : i32, i32, i32
  }
  func.func @transform_1(%arg0: i32) -> (i32, i32, i32) {
    %c0_i32 = arith.constant 0 : i32
    %c0_i32_0 = arith.constant 0 : i32
    %c0_i32_1 = arith.constant 0 : i32
    return %c0_i32, %arg0, %c0_i32_0 : i32, i32, i32
  }
}

</mosaic_0001>

<llo_original>
// kernel: stress_predictor.1
$region0: #{stress_predictor.1}
  #allocation0 [shape = 'u32[]', space=smem, size = 0x4, offset = 0x4, fixed_abs, tag = 'smem constant byte address 0x4 - core index']
  #allocation1 [shape = 'u32[144,128]{1,0:T(1,128)}', space=vmem, size = 0x12000, scoped, tag = 'internal scratch']
  %s0 = inlined_call_operand.vmem [shape: f32[3,8,128], index: 0, kind: input, shape index: {}]
  %s1 = inlined_call_operand.vmem [shape: f32[3,8,128], index: 1, kind: output, shape index: {}]
  %s2 = sld [smem:[#allocation0]]
  $region14: #{stress_predictor.1} parent=0
    _
  %s4 = ssub.s32 1, %s2
  %s5 = scalar_select 0, %s4, %s2
  // Predicated region
  $region2: #{stress_predictor.1} parent=0 // pred_check
    _
  $region3: #{stress_predictor.1} parent=0 // pred_check_branch
    %7 = sbr.rel (0) target = $region5
  $region4: #{stress_predictor.1} parent=0 // pred_region
    _
  $region5: #{stress_predictor.1} parent=0 // pred_fallthru
    _
  %v8 = vld [vmem:[%s0] sm:$0xff]
  %s9 = scalar_lea.vmem %s0, 8
  %v10 = vld [vmem:[%s9] sm:$0xff]
  %s11 = scalar_lea.vmem %s0, 16
  %v12 = vld [vmem:[%s11] sm:$0xff]
  %v13 = vmul.f32 %v8, 2.0
  %v14 = vadd.f32 %v13, 1.0
  %v15 = vmul.f32 %v10, 2.0
  %v16 = vadd.f32 %v15, 1.0
  %v17 = vsub.f32 %v14, %v16
  %v18 = vadd.f32 %v14, %v16
  %v19 = vmul.f32 %v17, %v17
  %v20 = vmul.f32 %v12, %v12
  %v21 = vmul.f32 %v20, 4.0
  %v22 = vadd.f32 %v19, %v21
  %v23 = vmax.f32 %v22, 1e-12
  %v24 = vrsqrt.pop %v23
  %v25 = vmul.f32 %v22, %v24
  %v26 = vsub.f32 %v18, %v25
  %v27 = vmul.f32 %v26, 0.5
  %v28 = vmax.f32 %v27, 1e-12
  %v29 = vadd.f32 %v18, %v25
  %v30 = vmul.f32 %v29, 0.5
  %v31 = vmax.f32 %v30, 1e-12
  %v32 = vmul.f32 %v28, %v31
  %v33 = vrsqrt.pop %v32
  %v34 = vmul.f32 %v33, %v33
  %v35 = vlog2.pop %v28
  %v36 = vmul.f32 %v35, 0.6931472
  %v37 = vlog2.pop %v31
  %v38 = vmul.f32 %v37, 0.6931472
  %v39 = vadd.f32 %v36, %v38
  %v40 = vmul.f32 %v36, 0.5
  %v41 = vmul.f32 %v39, 0.16666667
  %v42 = vsub.f32 %v40, %v41
  %v43 = vmul.f32 %v38, 0.5
  %v44 = vsub.f32 %v43, %v41
  %v45 = vmul.f32 %v42, 1.7
  %v46 = vmul.f32 %v45, 1.442695
  %v47 = vpow.pop %v46
  %v48 = vmul.f32 %v44, 1.7
  %v49 = vmul.f32 %v48, 1.442695
  %v50 = vpow.pop %v49
  %v51 = vmul.f32 %v39, -0.28333333
  %v52 = vmul.f32 %v51, 1.442695
  %v53 = vpow.pop %v52
  %v54 = vmul.f32 %v47, 1.5
  %v55 = vadd.f32 %v54, 0.0
  %v56 = vmul.f32 %v50, 1.5
  %v57 = vadd.f32 %v56, 0.0
  %v58 = vadd.f32 %v47, %v50
  %v59 = vadd.f32 %v58, %v53
  %v60 = vmul.f32 %v59, 1.5
  %v61 = vadd.f32 %v60, 0.0
  %v62 = vmul.f32 %v42, -1.4
  %v63 = vmul.f32 %v62, 1.442695
  %v64 = vpow.pop %v63
  %v65 = vmul.f32 %v44, -1.4
  %v66 = vmul.f32 %v65, 1.442695
  %v67 = vpow.pop %v66
  %v68 = vmul.f32 %v39, 0.23333333
  %v69 = vmul.f32 %v68, 1.442695
  %v70 = vpow.pop %v69
  %v71 = vmul.f32 %v64, -1.3
  %v72 = vadd.f32 %v55, %v71
  %v73 = vmul.f32 %v67, -1.3
  %v74 = vadd.f32 %v57, %v73
  %v75 = vadd.f32 %v64, %v67
  %v76 = vadd.f32 %v75, %v70
  %v77 = vmul.f32 %v76, -1.3
  %v78 = vadd.f32 %v61, %v77
  %v79 = vmul.f32 %v72, 0.5
  %v80 = vmul.f32 %v79, %v31
  %v81 = vmul.f32 %v80, %v34
  %v82 = vmul.f32 %v74, 0.5
  %v83 = vmul.f32 %v82, %v28
  %v84 = vmul.f32 %v83, %v34
  %v85 = vadd.f32 %v81, %v84
  %v86 = vsub.f32 %v84, %v81
  %v87 = vmul.f32 %v86, %v24
  %v88 = vsub.f32 1.0, %v33
  %v89 = vmul.f32 %v88, 0.5
  %v90 = vmul.f32 %v78, %v34
  %v91 = vmul.f32 %v90, 0.16666667
  %v92 = vsub.f32 %v89, %v91
  %v93 = vmul.f32 %v16, 2.0
  %v94 = vmul.f32 %v93, %v92
  %v95 = vadd.f32 %v94, %v85
  %v96 = vmul.f32 %v87, %v17
  %v97 = vadd.f32 %v95, %v96
  %98 = vst [vmem:[%s1] sm:$0xff] %v97
  %v99 = vmul.f32 %v14, 2.0
  %v100 = vmul.f32 %v99, %v92
  %v101 = vadd.f32 %v100, %v85
  %v102 = vsub.f32 %v101, %v96
  %s103 = scalar_lea.vmem %s1, 8
  %104 = vst [vmem:[%s103] sm:$0xff] %v102
  %v105 = vmul.f32 %v12, 2.0
  %v106 = vsub.f32 %v87, %v92
  %v107 = vmul.f32 %v105, %v106
  %s108 = scalar_lea.vmem %s1, 16
  %109 = vst [vmem:[%s108] sm:$0xff] %v107
  // Predicated region
  $region6: #{stress_predictor.1} parent=0 // pred_check
    _
  $region7: #{stress_predictor.1} parent=0 // pred_check_branch
    %111 = sbr.rel (0) target = $region9
  $region8: #{stress_predictor.1} parent=0 // pred_region
    _
  $region9: #{stress_predictor.1} parent=0 // pred_fallthru
    _
  // Predicated region
  $region10: #{stress_predictor.1} parent=0 // pred_check
    _
  $region11: #{stress_predictor.1} parent=0 // pred_check_branch
    %113 = sbr.rel (0) target = $region13
  $region12: #{stress_predictor.1} parent=0 // pred_region
    _
  $region13: #{stress_predictor.1} parent=0 // pred_fallthru
    _

</llo_original>
